<compile_context>
chip_gen: v7x
topology: tpu7x:2x2x1
jax: 0.10.0
libtpu: 0.0.40
codegen_flags: <defaults>
</compile_context>

<pallas_src>
import functools

import jax
import jax.numpy as jnp
from jax.experimental import pallas as pl
from jax.experimental.pallas import tpu as pltpu


# ----------------------------------------------------------------------------
# In-kernel helper: exact coset sum across the lane axis via an XLU roll tree.
#   v: (..., 128). Lanes {l, l+period, l+2*period, ...} (mod 128) all end up
#   holding the sum over their coset. `k = 128 // period` is a power of two.
# ----------------------------------------------------------------------------
def _lane_coset_sum(v, period, k):
    total = v
    shift = period
    while shift < period * k:
        total = total + pltpu.roll(total, shift=shift, axis=total.ndim - 1)
        shift *= 2
    return total


# ----------------------------------------------------------------------------
# Packed kernel (embed_dim < 128, lane-dense layout):
#   x_ref: (G, S//k, 128)   w_ref/b_ref: (1, 128)   o_ref: (G, S//k, 128)
#   Lane l holds channel d = l % D; the S samples of a channel live at the
#   S//k sublane rows x the k lane positions {d, d+D, ...}.
# ----------------------------------------------------------------------------
def _temporal_norm_kernel_packed(x_ref, w_ref, b_ref, o_ref, *, eps, seq_len, period, k):
    x = x_ref[...].astype(jnp.float32)                       # (G, S//k, 128)
    s1 = jnp.sum(x, axis=1)                                  # (G, 128) sublane partial sums
    mean = _lane_coset_sum(s1, period, k) * (1.0 / seq_len)  # (G, 128) per-channel mean
    diff = x - mean[:, None, :]                              # (G, S//k, 128)
    sq = jnp.sum(diff * diff, axis=1)                        # (G, 128)
    # torch.std default: unbiased (Bessel, N-1 divisor); eps added to std, not var.
    var = _lane_coset_sum(sq, period, k) * (1.0 / (seq_len - 1))
    inv_std = 1.0 / (jnp.sqrt(var) + eps)                    # exact, tiny tensor
    scale = w_ref[...].astype(jnp.float32) * inv_std         # (G, 128) fold weight in
    b = b_ref[...].astype(jnp.float32)                       # (1, 128)
    o_ref[...] = (diff * scale[:, None, :] + b).astype(o_ref.dtype)


# ----------------------------------------------------------------------------
# Plain kernel (embed_dim already lane-dense or packing not applicable):
#   x_ref: (G, S, D)   w_ref/b_ref: (1, D)   o_ref: (G, S, D)
# ----------------------------------------------------------------------------
def _temporal_norm_kernel(x_ref, w_ref, b_ref, o_ref, *, eps, seq_len):
    x = x_ref[...].astype(jnp.float32)                       # (G, S, D)
    mean = jnp.mean(x, axis=1, keepdims=True)                # (G, 1, D)
    diff = x - mean
    var = jnp.sum(diff * diff, axis=1, keepdims=True) * (1.0 / (seq_len - 1))
    inv_std = 1.0 / (jnp.sqrt(var) + eps)                    # (G, 1, D), small
    scale = w_ref[...].astype(jnp.float32) * inv_std         # (G, 1, D) fold weight in
    b = b_ref[...].astype(jnp.float32)                       # (1, D)
    o_ref[...] = (diff * scale + b).astype(o_ref.dtype)


# ----------------------------------------------------------------------------
# Wrapper
# ----------------------------------------------------------------------------
def temporal_norm(x, weight, bias, eps=1e-5):
    """x: (B, C, S, D); weight/bias: (D,) -> (B, C, S, D)."""
    B, C, S, D = x.shape
    assert S >= 2, "unbiased std needs at least 2 temporal elements"
    num_groups = B * C
    itemsize = jnp.dtype(x.dtype).itemsize

    # ---- layout: lane-dense packing of small embed_dim (free row-major reshape) ----
    k = (128 // D) if (D < 128 and 128 % D == 0) else 1
    use_packed = k > 1 and S % k == 0
    if use_packed:
        S_eff, D_eff = S // k, 128
        w_eff = jnp.tile(weight.reshape(-1), k).reshape(1, 128)
        b_eff = jnp.tile(bias.reshape(-1), k).reshape(1, 128)
        kernel = functools.partial(
            _temporal_norm_kernel_packed, eps=float(eps), seq_len=S, period=D, k=k)
    else:
        S_eff, D_eff = S, D
        w_eff = weight.reshape(1, D)
        b_eff = bias.reshape(1, D)
        kernel = functools.partial(_temporal_norm_kernel, eps=float(eps), seq_len=S)
    xf = x.reshape(num_groups, S_eff, D_eff)  # contiguity-preserving (free) reshape

    # ---- generation-aware VMEM budget & block sizing ----
    try:
        vmem_capacity = int(pltpu.get_tpu_info().vmem_capacity_bytes)
    except Exception:
        vmem_capacity = 64 * 1024 * 1024  # conservative fallback (v7x-sized)
    # Raise the scoped-VMEM limit well above the 16/32 MiB defaults, stay under HW.
    vmem_limit = int(min(vmem_capacity // 2, 96 * 1024 * 1024))

    # Per-group pipeline footprint: double-buffered input + output blocks (x.dtype)
    # plus ~3x block of f32 in-kernel intermediates (upcast, diff, result temp).
    bytes_per_group = S_eff * D_eff * (4 * itemsize + 3 * 4)
    block_g = max(1, int(0.75 * vmem_limit) // max(1, bytes_per_group))
    # Keep at least ~4 grid steps so both v7x TensorCores stream and the pipeline flows.
    if num_groups >= 4:
        block_g = min(block_g, max(1, num_groups // 4))
    block_g = min(block_g, num_groups)
    grid = (pl.cdiv(num_groups, block_g),)  # ragged last block: writes masked by Pallas

    # ---- cost estimate (mem-bound streaming norm) ----
    n_elems = num_groups * S * D
    cost = pl.CostEstimate(
        flops=8 * n_elems,
        transcendentals=num_groups * D,
        bytes_accessed=2 * n_elems * itemsize + 2 * D * 4,
    )

    in_specs = [
        pl.BlockSpec((block_g, S_eff, D_eff), lambda i: (i, 0, 0)),
        pl.BlockSpec((1, D_eff), lambda i: (0, 0)),
        pl.BlockSpec((1, D_eff), lambda i: (0, 0)),
    ]

    out = pl.pallas_call(
        kernel,
        out_shape=jax.ShapeDtypeStruct((num_groups, S_eff, D_eff), x.dtype),
        grid_spec=pltpu.PrefetchScalarGridSpec(
            num_scalar_prefetch=0,
            grid=grid,
            in_specs=in_specs,
            out_specs=pl.BlockSpec((block_g, S_eff, D_eff), lambda i: (i, 0, 0)),
        ),
        compiler_params=pltpu.CompilerParams(
            dimension_semantics=("parallel",),
            vmem_limit_bytes=vmem_limit,
        ),
        cost_estimate=cost,
    )(xf, w_eff, b_eff)

    return out.reshape(B, C, S, D)


# ----------------------------------------------------------------------------
# Pure-JAX reference (mirrors the PyTorch forward, unbiased std)
# ----------------------------------------------------------------------------
def temporal_norm_ref(x, weight, bias, eps=1e-5):
    x = x.astype(jnp.float32)
    mean = jnp.mean(x, axis=2, keepdims=True)
    var = jnp.sum((x - mean) ** 2, axis=2, keepdims=True) / (x.shape[2] - 1)
    std = jnp.sqrt(var) + eps
    return (x - mean) / std * weight + bias


if __name__ == "__main__":
    key = jax.random.PRNGKey(0)
    kx, kw, kb, kx2 = jax.random.split(key, 4)

    # Module-consistent shapes: batch=2, num_candidates=3, grid_size=4 -> S=16, embed_dim=32
    # (embed_dim=32 < 128 exercises the lane-dense packed path).
    B, C, grid_size, D = 2, 3, 4, 32
    S = grid_size * grid_size
    x = jax.random.normal(kx, (B, C, S, D), jnp.float32)
    weight = 1.0 + 0.1 * jax.random.normal(kw, (D,), jnp.float32)
    bias = 0.1 * jax.random.normal(kb, (D,), jnp.float32)

    out = jax.block_until_ready(temporal_norm(x, weight, bias, eps=1e-5))
    ref = temporal_norm_ref(x, weight, bias, eps=1e-5)
    assert out.shape == (B, C, S, D), out.shape
    assert bool(jnp.allclose(out, ref, rtol=1e-5, atol=1e-5)), (
        float(jnp.max(jnp.abs(out - ref))))

    # Also exercise the plain (already lane-dense, D = 128) path.
    B2, C2, S2, D2 = 1, 3, 8, 128
    x2 = jax.random.normal(kx2, (B2, C2, S2, D2), jnp.float32)
    w2 = jnp.ones((D2,), jnp.float32)
    b2 = jnp.zeros((D2,), jnp.float32)
    out2 = jax.block_until_ready(temporal_norm(x2, w2, b2, eps=1e-5))
    ref2 = temporal_norm_ref(x2, w2, b2, eps=1e-5)
    assert bool(jnp.allclose(out2, ref2, rtol=1e-5, atol=1e-5)), (
        float(jnp.max(jnp.abs(out2 - ref2))))

    print("KERNEL_OK")
</pallas_src>

<mosaic_0001>
module attributes {stable_mosaic.version = 11 : i64} {
  func.func @_temporal_norm_kernel_packed(%arg0: i32, %arg1: memref<1x4x128xf32, #tpu.memory_space<vmem>>, %arg2: memref<1x128xf32, #tpu.memory_space<vmem>>, %arg3: memref<1x128xf32, #tpu.memory_space<vmem>>, %arg4: memref<1x4x128xf32, #tpu.memory_space<vmem>>) attributes {dimension_semantics = [#tpu.dimension_semantics<parallel>], iteration_bounds = array<i64: 6>, scalar_prefetch = 0 : i64, scratch_operands = 0 : i64, tpu.core_type = #tpu.core_type<tc>, window_params = [{transform_indices = @transform_0, window_bounds = array<i64: 1, 4, 128>}, {pipeline_mode = #tpu.pipeline_mode<synchronous>, transform_indices = @transform_1, window_bounds = array<i64: 1, 128>}, {pipeline_mode = #tpu.pipeline_mode<synchronous>, transform_indices = @transform_2, window_bounds = array<i64: 1, 128>}, {transform_indices = @transform_3, window_bounds = array<i64: 1, 4, 128>}]} {
    %c0 = arith.constant 0 : index
    %c0_0 = arith.constant 0 : index
    %c0_1 = arith.constant 0 : index
    %0 = vector.load %arg1[%c0, %c0_0, %c0_1] : memref<1x4x128xf32, #tpu.memory_space<vmem>>, vector<1x4x128xf32>
    %cst = arith.constant dense<0.000000e+00> : vector<1x128xf32>
    %1 = vector.multi_reduction <add>, %0, %cst [1] : vector<1x4x128xf32> to vector<1x128xf32>
    %c32_i32 = arith.constant 32 : i32
    %2 = tpu.dynamic_rotate %1 by %c32_i32 dim 1 : vector<1x128xf32>, i32 -> vector<1x128xf32>
    %3 = arith.addf %1, %2 : vector<1x128xf32>
    %c64_i32 = arith.constant 64 : i32
    %4 = tpu.dynamic_rotate %3 by %c64_i32 dim 1 : vector<1x128xf32>, i32 -> vector<1x128xf32>
    %5 = arith.addf %3, %4 : vector<1x128xf32>
    %cst_2 = arith.constant 6.250000e-02 : f32
    %6 = vector.broadcast %cst_2 : f32 to vector<1x128xf32>
    %7 = arith.mulf %5, %6 : vector<1x128xf32>
    %8 = vector.shape_cast %7 : vector<1x128xf32> to vector<1x1x128xf32>
    %9 = vector.broadcast %8 : vector<1x1x128xf32> to vector<1x4x128xf32>
    %10 = arith.subf %0, %9 : vector<1x4x128xf32>
    %11 = arith.mulf %10, %10 : vector<1x4x128xf32>
    %cst_3 = arith.constant dense<0.000000e+00> : vector<1x128xf32>
    %12 = vector.multi_reduction <add>, %11, %cst_3 [1] : vector<1x4x128xf32> to vector<1x128xf32>
    %c32_i32_4 = arith.constant 32 : i32
    %13 = tpu.dynamic_rotate %12 by %c32_i32_4 dim 1 : vector<1x128xf32>, i32 -> vector<1x128xf32>
    %14 = arith.addf %12, %13 : vector<1x128xf32>
    %c64_i32_5 = arith.constant 64 : i32
    %15 = tpu.dynamic_rotate %14 by %c64_i32_5 dim 1 : vector<1x128xf32>, i32 -> vector<1x128xf32>
    %16 = arith.addf %14, %15 : vector<1x128xf32>
    %cst_6 = arith.constant 0.0666666701 : f32
    %17 = vector.broadcast %cst_6 : f32 to vector<1x128xf32>
    %18 = arith.mulf %16, %17 : vector<1x128xf32>
    %19 = math.sqrt %18 : vector<1x128xf32>
    %cst_7 = arith.constant 9.99999974E-6 : f32
    %20 = vector.broadcast %cst_7 : f32 to vector<1x128xf32>
    %21 = arith.addf %19, %20 : vector<1x128xf32>
    %cst_8 = arith.constant 1.000000e+00 : f32
    %22 = vector.broadcast %cst_8 : f32 to vector<1x128xf32>
    %23 = arith.divf %22, %21 : vector<1x128xf32>
    %c0_9 = arith.constant 0 : index
    %c0_10 = arith.constant 0 : index
    %24 = vector.load %arg2[%c0_9, %c0_10] : memref<1x128xf32, #tpu.memory_space<vmem>>, vector<1x128xf32>
    %25 = arith.mulf %24, %23 : vector<1x128xf32>
    %c0_11 = arith.constant 0 : index
    %c0_12 = arith.constant 0 : index
    %26 = vector.load %arg3[%c0_11, %c0_12] : memref<1x128xf32, #tpu.memory_space<vmem>>, vector<1x128xf32>
    %27 = vector.shape_cast %25 : vector<1x128xf32> to vector<1x1x128xf32>
    %28 = vector.broadcast %27 : vector<1x1x128xf32> to vector<1x4x128xf32>
    %29 = arith.mulf %10, %28 : vector<1x4x128xf32>
    %30 = vector.shape_cast %26 : vector<1x128xf32> to vector<1x1x128xf32>
    %31 = vector.broadcast %30 : vector<1x1x128xf32> to vector<1x4x128xf32>
    %32 = arith.addf %29, %31 : vector<1x4x128xf32>
    %c0_13 = arith.constant 0 : index
    %c0_14 = arith.constant 0 : index
    %c0_15 = arith.constant 0 : index
    %33 = vector.load %arg4[%c0_13, %c0_14, %c0_15] : memref<1x4x128xf32, #tpu.memory_space<vmem>>, vector<1x4x128xf32>
    tpu.vector_store %arg4[%c0_13, %c0_14, %c0_15], %32 {strides = array<i32>} : memref<1x4x128xf32, #tpu.memory_space<vmem>>, vector<1x4x128xf32>,
    return
  }
  func.func @transform_0(%arg0: i32) -> (i32, i32, i32) {
    %c0_i32 = arith.constant 0 : i32
    %c0_i32_0 = arith.constant 0 : i32
    %c0_i32_1 = arith.constant 0 : i32
    return %arg0, %c0_i32, %c0_i32_0 : i32, i32, i32
  }
  func.func @transform_1(%arg0: i32) -> (i32, i32) {
    %c0_i32 = arith.constant 0 : i32
    %c0_i32_0 = arith.constant 0 : i32
    %c0_i32_1 = arith.constant 0 : i32
    return %c0_i32, %c0_i32_0 : i32, i32
  }
  func.func @transform_2(%arg0: i32) -> (i32, i32) {
    %c0_i32 = arith.constant 0 : i32
    %c0_i32_0 = arith.constant 0 : i32
    %c0_i32_1 = arith.constant 0 : i32
    return %c0_i32, %c0_i32_0 : i32, i32
  }
  func.func @transform_3(%arg0: i32) -> (i32, i32, i32) {
    %c0_i32 = arith.constant 0 : i32
    %c0_i32_0 = arith.constant 0 : i32
    %c0_i32_1 = arith.constant 0 : i32
    return %arg0, %c0_i32, %c0_i32_0 : i32, i32, i32
  }
}

</mosaic_0001>

<llo_original>
// kernel: tpu_custom_call.1
$region0: #{tpu_custom_call.1}
  #allocation0 [shape = 'u32[]', space=smem, size = 0x4, offset = 0x4, fixed_abs, tag = 'smem constant byte address 0x4 - core index']
  #allocation1 [shape = 'u32[144,128]{1,0:T(1,128)}', space=vmem, size = 0x12000, scoped, tag = 'internal scratch']
  %s0 = inlined_call_operand.hbm [shape: f32[6,4,128], index: 0, kind: input, shape index: {}]
  %s1 = inlined_call_operand.vmem [shape: f32[1,128], index: 1, kind: input, shape index: {}]
  %s2 = inlined_call_operand.vmem [shape: f32[1,128], index: 2, kind: input, shape index: {}]
  %s3 = inlined_call_operand.hbm [shape: f32[6,4,128], index: 3, kind: output, shape index: {}]
  %s4 = sld [smem:[#allocation0]]
  $region49: #{tpu_custom_call.1} parent=0
    _
  %s6 = ssub.s32 1, %s4
  %s7 = scalar_select 0, %s6, %s4
  $region1: #{tpu_custom_call.1} parent=0
    #allocation2 [shape = 'u8[4096]{0}', space=vmem, size = 0x1000, scoped, tag = 'input window, operand 0']
    #allocation3 [shape = 's32[2]{0}', space=sflag, size = 0x8, scoped, tag = 'scoped memory for tpu_custom_call.1']
    #allocation4 [shape = 's32[2]{0}', space=sflag, size = 0x8, scoped, tag = 'scoped memory for tpu_custom_call.1']
    #allocation5 [shape = 'u8[4096]{0}', space=vmem, size = 0x1000, scoped, tag = 'output window, operand 0']
    %8 = vsyncpa [#allocation3], 0
    %s9 = scalar_lea.sflag [#allocation3], 1
    %10 = vsyncpa %s9, 0
    %11 = vsyncpa [#allocation4], 0
    %s12 = scalar_lea.sflag [#allocation4], 1
    %13 = vsyncpa %s12, 0
    loop: start=0, step=1, limit=8
    $region2: #{tpu_custom_call.1} parent=1 // loop_pre_header
      _
    $region3: #{tpu_custom_call.1} parent=1 // loop_header
      %s15 = sphi 0, %s19
      %p16 = scmp.ge.s32.totalorder %s15, 8
      %s25 = sphi 0, %s27
      %s28 = sphi 0, %s25
      %s29 = sphi 0, %s28
      %s45 = sphi 0, %s29
      %s49 = sphi 0, %s49
      %s51 = sphi 0, %s49
      %s52 = sphi 0, %s51
      %s66 = sphi 0, %s52
      %s70 = sphi 0, %s70
      %s72 = sphi 0, %s70
      %s73 = sphi 0, %s72
      %s87 = sphi 0, %s73
      %s93 = sphi 0, %s95
      %s96 = sphi 0, %s93
      %s97 = sphi 0, %s96
      %s113 = sphi 0, %s97
    $region4: #{tpu_custom_call.1} parent=1 // loop_header_branch
      %18 = sbr.rel (%p16) target = $region8
    $region5: #{tpu_custom_call.1} parent=1 // loop_body
      %s20 = ssub.s32 %s15, 1
      %s21 = ssub.s32 %s15, 2
      %s22 = sadd.s32 %s15, 1
      %s23 = ssub.s32 %s15, %s22
      %p24 = scmp.eq.s32.totalorder %s23, 0
      %s26 = sadd.s32 %s25, 1
      %s27 = scalar_select %p24, %s25, %s26
      %p30 = pneg %p24
      %p31 = scmp.eq.s32.totalorder %s15, 5
      %p32 = por %p30, %p31
      %p33 = scmp.ne.s32.totalorder %s25, %s28
      %p34 = scmp.eq.s32.totalorder %s15, 0
      %p35 = por %p33, %p34
      %p36 = scmp.ne.s32.totalorder %s25, %s28
      %p37 = scmp.eq.s32.totalorder %s20, 5
      %p38 = por %p36, %p37
      %p39 = scmp.ne.s32.totalorder %s28, %s29
      %p40 = scmp.eq.s32.totalorder %s20, 0
      %p41 = por %p39, %p40
      %p42 = scmp.ne.s32.totalorder %s28, %s29
      %p43 = scmp.eq.s32.totalorder %s21, 5
      %p44 = por %p42, %p43
      %p46 = scmp.ne.s32.totalorder %s29, %s45
      %p47 = scmp.eq.s32.totalorder %s21, 0
      %p48 = por %p46, %p47
      %s50 = sadd.s32 %s49, 1
      %p53 = scmp.eq.s32.totalorder %s15, 5
      %p54 = scmp.ne.s32.totalorder %s49, %s51
      %p55 = scmp.eq.s32.totalorder %s15, 0
      %p56 = por %p54, %p55
      %p57 = scmp.ne.s32.totalorder %s49, %s51
      %p58 = scmp.eq.s32.totalorder %s20, 5
      %p59 = por %p57, %p58
      %p60 = scmp.ne.s32.totalorder %s51, %s52
      %p61 = scmp.eq.s32.totalorder %s20, 0
      %p62 = por %p60, %p61
      %p63 = scmp.ne.s32.totalorder %s51, %s52
      %p64 = scmp.eq.s32.totalorder %s21, 5
      %p65 = por %p63, %p64
      %p67 = scmp.ne.s32.totalorder %s52, %s66
      %p68 = scmp.eq.s32.totalorder %s21, 0
      %p69 = por %p67, %p68
      %s71 = sadd.s32 %s70, 1
      %p74 = scmp.eq.s32.totalorder %s15, 5
      %p75 = scmp.ne.s32.totalorder %s70, %s72
      %p76 = scmp.eq.s32.totalorder %s15, 0
      %p77 = por %p75, %p76
      %p78 = scmp.ne.s32.totalorder %s70, %s72
      %p79 = scmp.eq.s32.totalorder %s20, 5
      %p80 = por %p78, %p79
      %p81 = scmp.ne.s32.totalorder %s72, %s73
      %p82 = scmp.eq.s32.totalorder %s20, 0
      %p83 = por %p81, %p82
      %p84 = scmp.ne.s32.totalorder %s72, %s73
      %p85 = scmp.eq.s32.totalorder %s21, 5
      %p86 = por %p84, %p85
      %p88 = scmp.ne.s32.totalorder %s73, %s87
      %p89 = scmp.eq.s32.totalorder %s21, 0
      %p90 = por %p88, %p89
      %s91 = ssub.s32 %s15, %s22
      %p92 = scmp.eq.s32.totalorder %s91, 0
      %s94 = sadd.s32 %s93, 1
      %s95 = scalar_select %p92, %s93, %s94
      %p98 = pneg %p92
      %p99 = scmp.eq.s32.totalorder %s15, 5
      %p100 = por %p98, %p99
      %p101 = scmp.ne.s32.totalorder %s93, %s96
      %p102 = scmp.eq.s32.totalorder %s15, 0
      %p103 = por %p101, %p102
      %p104 = scmp.ne.s32.totalorder %s93, %s96
      %p105 = scmp.eq.s32.totalorder %s20, 5
      %p106 = por %p104, %p105
      %p107 = scmp.ne.s32.totalorder %s96, %s97
      %p108 = scmp.eq.s32.totalorder %s20, 0
      %p109 = por %p107, %p108
      %p110 = scmp.ne.s32.totalorder %s96, %s97
      %p111 = scmp.eq.s32.totalorder %s21, 5
      %p112 = por %p110, %p111
      %p114 = scmp.ne.s32.totalorder %s97, %s113
      %p115 = scmp.eq.s32.totalorder %s21, 0
      %p116 = por %p114, %p115
      %p117 = scmp.le.s32.totalorder 1, %s15
      %p118 = scmp.lt.s32.totalorder %s15, 7
      %p119 = pnand %p117, %p118
      %p120 = pneg %p119
      // Predicated region
      $region9: #{tpu_custom_call.1} parent=5 // pred_check
        _
      $region10: #{tpu_custom_call.1} parent=5 // pred_check_branch
        %122 = sbr.rel (%p119) target = $region12
      $region11: #{tpu_custom_call.1} parent=5 // pred_region
        %s123 = ssub.s32 %s15, 1
        // Predicated region
        $region13: #{tpu_custom_call.1} parent=11 // pred_check
          %p124 = pneg %p62
        $region14: #{tpu_custom_call.1} parent=11 // pred_check_branch
          %126 = sbr.rel (%p124) target = $region16
        $region15: #{tpu_custom_call.1} parent=11 // pred_region
          _
        $region16: #{tpu_custom_call.1} parent=11 // pred_fallthru
          _
        // Predicated region
        $region17: #{tpu_custom_call.1} parent=11 // pred_check
          %p127 = pneg %p83
        $region18: #{tpu_custom_call.1} parent=11 // pred_check_branch
          %129 = sbr.rel (%p127) target = $region20
        $region19: #{tpu_custom_call.1} parent=11 // pred_region
          _
        $region20: #{tpu_custom_call.1} parent=11 // pred_fallthru
          _
      $region12: #{tpu_custom_call.1} parent=5 // pred_fallthru
        _
      %p130 = scmp.lt.s32.totalorder %s15, 6
      // Predicated region
      $region21: #{tpu_custom_call.1} parent=5 // pred_check
        %p131 = pneg %p130
      $region22: #{tpu_custom_call.1} parent=5 // pred_check_branch
        %133 = sbr.rel (%p131) target = $region24
      $region23: #{tpu_custom_call.1} parent=5 // pred_region
        // Predicated region
        $region25: #{tpu_custom_call.1} parent=23 // pred_check
          %p134 = pneg %p35
        $region26: #{tpu_custom_call.1} parent=23 // pred_check_branch
          %136 = sbr.rel (%p134) target = $region28
        $region27: #{tpu_custom_call.1} parent=23 // pred_region
          %s137 = sand.u32 %s25, 1
          %s138 = scalar_lea.sflag [#allocation3], %s137
          %s139 = sand.u32 %s25, 1
          %s140 = smul.addr %s139, 4
          %s141 = scalar_lea.vmem [#allocation2], %s140
          %s143 = ssub.s32 64, 64
          %144 = vsyncadd %s138, %s143
          %s145 = smul.addr %s15, 64
          %s146 = scalar_lea.hbm %s0, %s145
          %s148 = sshll.u32 %s141, 4
          %s149 = int_to_ptr.vmem [resolvable:$true] %s148
          %151 = dma.hbm_to_vmem [thread:$0]  %s146, 64, %s149, %s138
        $region28: #{tpu_custom_call.1} parent=23 // pred_fallthru
          _
      $region24: #{tpu_custom_call.1} parent=5 // pred_fallthru
        _
      %p152 = scmp.le.s32.totalorder 1, %s15
      %p153 = scmp.lt.s32.totalorder %s15, 7
      %p154 = pnand %p152, %p153
      %p155 = pneg %p154
      // Predicated region
      $region29: #{tpu_custom_call.1} parent=5 // pred_check
        _
      $region30: #{tpu_custom_call.1} parent=5 // pred_check_branch
        %157 = sbr.rel (%p154) target = $region32
      $region31: #{tpu_custom_call.1} parent=5 // pred_region
        %s158 = ssub.s32 %s15, 1
        %s159 = sand.u32 %s28, 1
        %s160 = scalar_lea.sflag [#allocation3], %s159
        %s161 = sand.u32 %s28, 1
        %s162 = smul.addr %s161, 4
        %s163 = scalar_lea.vmem [#allocation2], %s162
        // Predicated region
        $region33: #{tpu_custom_call.1} parent=31 // pred_check
          %p164 = pneg %p41
        $region34: #{tpu_custom_call.1} parent=31 // pred_check_branch
          %166 = sbr.rel (%p164) target = $region36
        $region35: #{tpu_custom_call.1} parent=31 // pred_region
          %167 = dma.done %s160, 64
        $region36: #{tpu_custom_call.1} parent=31 // pred_fallthru
          _
        %s168 = sand.u32 %s28, 1
        %s169 = scalar_lea.sflag [#allocation3], %s168
        %s170 = sand.u32 %s28, 1
        %s171 = smul.addr %s170, 4
        %s172 = scalar_lea.vmem [#allocation2], %s171
        %p173 = pneg %p41
        %p174 = pneg %p38
        %p175 = pneg %p62
        %p176 = pneg %p59
        %p177 = pneg %p83
        %p178 = pneg %p80
        %p179 = pneg %p109
        %p180 = pneg %p106
        %s181 = sand.u32 %s96, 1
        %s182 = scalar_lea.sflag [#allocation4], %s181
        %s183 = sand.u32 %s96, 1
        %s184 = smul.addr %s183, 4
        %s185 = scalar_lea.vmem [#allocation5], %s184
        %v186 = vld [vmem:[%s163] sm:$0xf]
        %vm187 = vcmask 1043456
        %v188 = vsel %vm187, %v186, 0.0
        %v189 = vrot.slane %v188, 4
        %v190 = vadd.f32 %v188, %v189
        %v191 = vrot.slane %v190, 2
        %v192 = vadd.f32 %v190, %v191
        %v193 = vrot.slane %v192, 1
        %v194 = vadd.f32 %v192, %v193
        %195 = vrot.lane.b32.xlu0 %v194, 32
        %v196 = vpop.permute.xlu0 %195
        %v197 = vadd.f32 %v194, %v196
        %198 = vrot.lane.b32.xlu0 %v197, 64
        %v199 = vpop.permute.xlu0 %198
        %v200 = vadd.f32 %v197, %v199
        %v201 = vmul.f32 %v200, 0.0625
        %v202 = vlaneseq
        %v203 = vshrl.u32 %v202, 7
        %v204 = vsub.s32 0, %v203
        %v205 = vrot.slane %v201, %v204
        %v206 = vsub.f32 %v186, %v205
        %v207 = vmul.f32 %v206, %v206
        %v208 = vsel %vm187, %v207, 0.0
        %v209 = vrot.slane %v208, 4
        %v210 = vadd.f32 %v208, %v209
        %v211 = vrot.slane %v210, 2
        %v212 = vadd.f32 %v210, %v211
        %v213 = vrot.slane %v212, 1
        %v214 = vadd.f32 %v212, %v213
        %215 = vrot.lane.b32.xlu0 %v214, 32
        %v216 = vpop.permute.xlu0 %215
        %v217 = vadd.f32 %v214, %v216
        %218 = vrot.lane.b32.xlu0 %v217, 64
        %v219 = vpop.permute.xlu0 %218
        %v220 = vadd.f32 %v217, %v219
        %v221 = vmul.f32 %v220, 0.06666667
        %v222 = vrsqrt.pop %v221
        %v223 = vmul.f32 %v221, %v222
        %vm224 = vcmp.eq.f32.partialorder %v221, inf
        %v225 = vsel %vm224, %v221, %v223
        %vm226 = vcmp.eq.f32.partialorder %v221, 0.0
        %v227 = vand.u32 %v221, 2147483648
        %v228 = vsel %vm226, %v227, %v225
        %v229 = vadd.f32 %v228, 1e-05
        %v230 = vrcp.pop %v229
        %v231 = vmul.f32 1.0, %v230
        %v232 = vld [vmem:[%s1] sm:$0x1]
        %v233 = vmul.f32 %v232, %v231
        %v234 = vld [vmem:[%s2] sm:$0x1]
        %v236 = vlaneseq
        %v237 = vshrl.u32 %v236, 7
        %v238 = vsub.s32 0, %v237
        %v239 = vrot.slane %v233, %v238
        %v241 = vmul.f32 %v206, %v239
        %v243 = vlaneseq
        %v244 = vshrl.u32 %v243, 7
        %v245 = vsub.s32 0, %v244
        %v246 = vrot.slane %v234, %v245
        %v248 = vadd.f32 %v241, %v246
        %249 = vst [vmem:[%s185] sm:$0xf] %v248
        %s250 = sand.u32 %s96, 1
        %s251 = scalar_lea.sflag [#allocation4], %s250
        %s252 = sand.u32 %s96, 1
        %s253 = smul.addr %s252, 4
        %s254 = scalar_lea.vmem [#allocation5], %s253
        // Predicated region
        $region37: #{tpu_custom_call.1} parent=31 // pred_check
          %p255 = pneg %p106
        $region38: #{tpu_custom_call.1} parent=31 // pred_check_branch
          %257 = sbr.rel (%p255) target = $region40
        $region39: #{tpu_custom_call.1} parent=31 // pred_region
          %s259 = ssub.s32 64, 64
          %260 = vsyncadd %s251, %s259
          %s261 = smul.addr %s20, 64
          %s262 = scalar_lea.hbm %s3, %s261
          %s264 = sshll.u32 %s254, 4
          %s265 = int_to_ptr.vmem [resolvable:$true] %s264
          %267 = dma.vmem_to_hbm [thread:$0]  %s265, 64, %s262, %s251
        $region40: #{tpu_custom_call.1} parent=31 // pred_fallthru
          _
      $region32: #{tpu_custom_call.1} parent=5 // pred_fallthru
        _
      %p268 = scmp.le.s32.totalorder 2, %s15
      // Predicated region
      $region41: #{tpu_custom_call.1} parent=5 // pred_check
        %p269 = pneg %p268
      $region42: #{tpu_custom_call.1} parent=5 // pred_check_branch
        %271 = sbr.rel (%p269) target = $region44
      $region43: #{tpu_custom_call.1} parent=5 // pred_region
        %s272 = ssub.s32 %s15, 2
        // Predicated region
        $region45: #{tpu_custom_call.1} parent=43 // pred_check
          %p273 = pneg %p112
        $region46: #{tpu_custom_call.1} parent=43 // pred_check_branch
          %275 = sbr.rel (%p273) target = $region48
        $region47: #{tpu_custom_call.1} parent=43 // pred_region
          %s276 = sand.u32 %s97, 1
          %s277 = scalar_lea.sflag [#allocation4], %s276
          %s278 = sand.u32 %s97, 1
          %s279 = smul.addr %s278, 4
          %s280 = scalar_lea.vmem [#allocation5], %s279
          %281 = dma.done %s277, 64
        $region48: #{tpu_custom_call.1} parent=43 // pred_fallthru
          _
      $region44: #{tpu_custom_call.1} parent=5 // pred_fallthru
        _
    $region6: #{tpu_custom_call.1} parent=1 // loop_footer
      %s19 = sadd.s32 1, %s15
    $region7: #{tpu_custom_call.1} parent=1 // loop_footer_branch
      %14 = sbr.rel target = $region3
    $region8: #{tpu_custom_call.1} parent=1 // loop_exit
      _
    %282 = vsyncpa [#allocation3], 1
    %s283 = scalar_lea.sflag [#allocation3], 1
    %284 = vsyncpa %s283, 1
    %285 = vsyncpa [#allocation4], 1
    %s286 = scalar_lea.sflag [#allocation4], 1
    %287 = vsyncpa %s286, 1

</llo_original>
